<compile_context>
chip_gen: v7x
topology: tpu7x:2x2x1
jax: 0.10.0
libtpu: 0.0.40
codegen_flags: <defaults>
</compile_context>

<pallas_src>
import math
import functools

import jax
import jax.numpy as jnp
from jax import lax
from jax.experimental import pallas as pl
from jax.experimental.pallas import tpu as pltpu


def _build_pe_table(max_len: int, d_model: int) -> jnp.ndarray:
    """Deterministic sinusoidal PE table, shape (max_len, d_model), float32."""
    position = jnp.arange(max_len, dtype=jnp.float32)[:, None]                 # (L, 1)
    div_term = jnp.exp(
        jnp.arange(0.0, float(d_model), 2.0, dtype=jnp.float32)
        * (-math.log(10000.0) / d_model)
    )                                                                           # (D/2,)
    angles = position * div_term                                                # (L, D/2)
    pe = jnp.zeros((max_len, d_model), dtype=jnp.float32)
    pe = pe.at[:, 0::2].set(jnp.sin(angles))
    pe = pe.at[:, 1::2].set(jnp.cos(angles))
    return pe


def prepare_pe_slab(pe_table: jnp.ndarray, dtype) -> jnp.ndarray:
    """One-time module-init work: cast + flatten PE to a lane-dense (1, max_len*d_model) slab.

    Row-major flattening means the first S*d_model columns are exactly pe[:S, :] flattened,
    so the forward pass only needs a cheap contiguous slice (no cast, no transpose).
    """
    L, D = pe_table.shape
    return pe_table.astype(dtype).reshape(1, L * D)


def _on_tpu() -> bool:
    try:
        return jax.devices()[0].platform == "tpu"
    except Exception:
        return False


def _default_per_buffer_bytes() -> int:
    """Per-generation tile budget: 4 MiB/buffer on 128-MiB-VMEM parts (v5e/v6e), else 2 MiB."""
    try:
        info = pltpu.get_tpu_info()
        vmem = getattr(info, "vmem_capacity_bytes", None)
        if vmem is not None and vmem >= 96 * (1 << 20):
            return 4 * (1 << 20)
    except Exception:
        pass
    return 2 * (1 << 20)


def _pe_dropout_kernel(seed_ref, x_ref, pe_ref, o_ref, *,
                       dropout_p, training, total_cols, use_hw_prng):
    # x_ref : (tb, tF) tile of the (B, S*D) view
    # pe_ref: (1,  tF) tile of the (1, S*D) PE row (broadcast over the batch rows)
    y = x_ref[...] + pe_ref[...]                      # (tb,tF) + (1,tF) broadcast add

    if training and 0.0 < dropout_p < 1.0:
        i = pl.program_id(0)                          # column-tile index (flattened S*D axis)
        j = pl.program_id(1)                          # row-tile index (batch axis)
        tb, tf = x_ref.shape

        if use_hw_prng:
            # Hardware PRNG: one vreg-wide draw per element, no VALU hash chain.
            # Seed folds in the tile coordinates so the mask is tile-unique & reproducible.
            pltpu.prng_seed(seed_ref[0], i, j)
            bits = pltpu.prng_random_bits((tb, tf))
            if bits.dtype != jnp.uint32:
                bits = pltpu.bitcast(bits, jnp.uint32)
        else:
            # Fallback (interpret mode / non-TPU): stateless lowbias32 hash of the global
            # flat element index, computed in uint32 (well-defined wraparound, no int32
            # overflow) with the tile base folded into a single scalar.
            base = (j.astype(jnp.uint32) * jnp.uint32(tb)) * jnp.uint32(total_cols) \
                   + i.astype(jnp.uint32) * jnp.uint32(tf)
            seed_u = seed_ref[0].astype(jnp.uint32) * jnp.uint32(0x9E3779B9)
            rows = lax.broadcasted_iota(jnp.int32, (tb, tf), 0).astype(jnp.uint32)
            cols = lax.broadcasted_iota(jnp.int32, (tb, tf), 1).astype(jnp.uint32)
            h = (base + rows * jnp.uint32(total_cols) + cols) ^ seed_u
            h = h ^ (h >> 16)
            h = h * jnp.uint32(0x7FEB352D)
            h = h ^ (h >> 15)
            h = h * jnp.uint32(0x846CA68B)
            h = h ^ (h >> 16)
            bits = h

        thresh = jnp.uint32(int(round(float(dropout_p) * (1 << 24))))
        keep = (bits >> 8) >= thresh                  # integer keep-test, P(keep) = 1 - p

        scale = jnp.asarray(1.0 / (1.0 - float(dropout_p)), dtype=y.dtype)
        y = jnp.where(keep, y * scale, jnp.zeros_like(y))

    o_ref[...] = y.astype(o_ref.dtype)


_MEGACORE_SPLIT_BYTES = 1 << 20   # only force a >=2-tile grid when the tensor is >= 1 MiB


def positional_encoding_forward(x, pe_slab, *, dropout_p=0.1, training=True, seed=0,
                                per_buffer_bytes=None, use_hw_prng=None):
    """x: (B, S, D). pe_slab: (1, max_len*D) pre-cast PE slab. Returns (B, S, D), dtype of x."""
    B, S, D = x.shape
    F = S * D
    assert pe_slab.ndim == 2 and pe_slab.shape[0] == 1 and pe_slab.shape[1] >= F, \
        "PE slab too short for this sequence length"

    if training and dropout_p >= 1.0:
        return jnp.zeros_like(x)                      # torch Dropout(p=1) semantics

    if per_buffer_bytes is None:
        per_buffer_bytes = _default_per_buffer_bytes()
    if use_hw_prng is None:
        use_hw_prng = _on_tpu()

    # Lane-dense 2D views: x -> (B, F), pe -> (1, F) (slice of the precomputed slab, no cast).
    x2d = x.reshape(B, F)
    pe2d = pe_slab[:, :F]
    if pe2d.dtype != x.dtype:                         # fallback if slab was built for another dtype
        pe2d = pe2d.astype(x.dtype)
    seed_arr = jnp.array([seed], dtype=jnp.int32)

    elem_bytes = x.dtype.itemsize
    pack = max(8, 32 // max(1, elem_bytes))           # sublane packing: f32->8, bf16->16, i8->32

    # Batch-row tile: multiple of the sublane packing, up to 64 rows (fewer grid steps for big B).
    if B <= pack:
        tb = B                                        # equals full dim -> layout constraint satisfied
    else:
        tb = min(64, (B // pack) * pack)

    # Column tile: largest 128-multiple within the per-buffer budget, preferring exact divisors
    # of F so every store is a full-width unmasked vst.
    budget_cols = max(128, per_buffer_bytes // (elem_bytes * tb))
    if F <= budget_cols:
        tF = F
    else:
        cand = (budget_cols // 128) * 128
        tF = cand
        t = cand
        while t >= 128:
            if F % t == 0:
                tF = t
                break
            t -= 128

    n_col = pl.cdiv(F, tF)
    n_row = pl.cdiv(B, tb)

    # v7x megacore: "parallel" semantics only help with >=2 grid tiles. For non-trivial problems
    # that would otherwise collapse to grid=(1,1), split the column axis in two.
    total_bytes = B * F * elem_bytes
    if n_col == 1 and n_row == 1 and total_bytes >= _MEGACORE_SPLIT_BYTES and F >= 256:
        tF = ((F + 1) // 2 + 127) // 128 * 128
        n_col = pl.cdiv(F, tF)

    # VMEM limit from the actual working set: double-buffered x + out tiles, double-buffered PE
    # row tile, plus margin for compiler-internal scratch.  Capped well under v7x's 64 MiB.
    working_set = 2 * (tb * tF * elem_bytes) * 2 + 2 * (tF * elem_bytes)
    vmem_limit = int(min(64 << 20, max(16 << 20, working_set + (8 << 20))))

    kernel = functools.partial(
        _pe_dropout_kernel,
        dropout_p=float(dropout_p),
        training=bool(training),
        total_cols=F,
        use_hw_prng=bool(use_hw_prng),
    )

    out2d = pl.pallas_call(
        kernel,
        out_shape=jax.ShapeDtypeStruct((B, F), x.dtype),
        grid_spec=pltpu.PrefetchScalarGridSpec(
            num_scalar_prefetch=1,                    # seed -> SMEM
            # Column tiles outer, row tiles inner: the PE block index only changes on the outer
            # axis, so the pipeliner fetches each PE tile once per column tile.
            grid=(n_col, n_row),
            in_specs=[
                pl.BlockSpec((tb, tF), lambda i, j, seed: (j, i)),   # x tile
                pl.BlockSpec((1, tF), lambda i, j, seed: (0, i)),    # PE tile (shared over rows)
            ],
            out_specs=pl.BlockSpec((tb, tF), lambda i, j, seed: (j, i)),
        ),
        compiler_params=pltpu.CompilerParams(
            dimension_semantics=("parallel", "parallel"),   # no accumulator -> megacore-shardable
            vmem_limit_bytes=vmem_limit,
        ),
    )(seed_arr, x2d, pe2d)

    return out2d.reshape(B, S, D)


if __name__ == "__main__":
    d_model = 32
    max_len = 64
    batch, seq = 2, 8
    dropout_p = 0.1

    key = jax.random.PRNGKey(0)
    x = jax.random.normal(key, (batch, seq, d_model), dtype=jnp.float32)

    # Module "init": build the PE buffer and the lane-dense slab once.
    pe_table = _build_pe_table(max_len, d_model)
    pe_slab = prepare_pe_slab(pe_table, x.dtype)

    # Eval mode (dropout disabled): out == x + pe.
    out_eval = positional_encoding_forward(x, pe_slab, dropout_p=dropout_p, training=False)
    jax.block_until_ready(out_eval)
    ref = x + pe_table[None, :seq, :]
    assert out_eval.shape == (batch, seq, d_model)
    assert jnp.allclose(out_eval, ref, atol=1e-5), "eval-mode mismatch"

    # Training mode: inverted dropout — every element is either 0 or (x+pe)/(1-p).
    out_train = positional_encoding_forward(x, pe_slab, dropout_p=dropout_p,
                                            training=True, seed=0)
    jax.block_until_ready(out_train)
    assert out_train.shape == (batch, seq, d_model)
    scaled = ref * (1.0 / (1.0 - dropout_p))
    consistent = jnp.logical_or(jnp.abs(out_train) < 1e-6,
                                jnp.abs(out_train - scaled) < 1e-4)
    assert bool(jnp.all(consistent)), "training-mode dropout values inconsistent"

    print("KERNEL_OK")
</pallas_src>

<mosaic_0001>
module attributes {stable_mosaic.version = 11 : i64} {
  func.func @_pe_dropout_kernel(%arg0: i32, %arg1: i32, %arg2: memref<1xi32, #tpu.memory_space<smem>>, %arg3: memref<2x256xf32, #tpu.memory_space<vmem>>, %arg4: memref<1x256xf32, #tpu.memory_space<vmem>>, %arg5: memref<2x256xf32, #tpu.memory_space<vmem>>) attributes {dimension_semantics = [#tpu.dimension_semantics<parallel>, #tpu.dimension_semantics<parallel>], iteration_bounds = array<i64: 1, 1>, scalar_prefetch = 1 : i64, scratch_operands = 0 : i64, tpu.core_type = #tpu.core_type<tc>, window_params = [{transform_indices = @transform_0, window_bounds = array<i64: 2, 256>}, {transform_indices = @transform_1, window_bounds = array<i64: 1, 256>}, {transform_indices = @transform_2, window_bounds = array<i64: 2, 256>}]} {
    %c0 = arith.constant 0 : index
    %c0_0 = arith.constant 0 : index
    %0 = vector.load %arg3[%c0, %c0_0] : memref<2x256xf32, #tpu.memory_space<vmem>>, vector<2x256xf32>
    %c0_1 = arith.constant 0 : index
    %c0_2 = arith.constant 0 : index
    %1 = vector.load %arg4[%c0_1, %c0_2] : memref<1x256xf32, #tpu.memory_space<vmem>>, vector<1x256xf32>
    %2 = vector.broadcast %1 : vector<1x256xf32> to vector<2x256xf32>
    %3 = arith.addf %0, %2 : vector<2x256xf32>
    %c0_3 = arith.constant 0 : index
    %c0_4 = arith.constant 0 : index
    %4 = vector.load %arg5[%c0_3, %c0_4] : memref<2x256xf32, #tpu.memory_space<vmem>>, vector<2x256xf32>
    tpu.vector_store %arg5[%c0_3, %c0_4], %3 {strides = array<i32>} : memref<2x256xf32, #tpu.memory_space<vmem>>, vector<2x256xf32>,
    return
  }
  func.func @transform_0(%arg0: i32, %arg1: i32, %arg2: memref<1xi32, #tpu.memory_space<smem>>) -> (i32, i32) {
    %c0_i32 = arith.constant 0 : i32
    return %arg1, %arg0 : i32, i32
  }
  func.func @transform_1(%arg0: i32, %arg1: i32, %arg2: memref<1xi32, #tpu.memory_space<smem>>) -> (i32, i32) {
    %c0_i32 = arith.constant 0 : i32
    %c0_i32_0 = arith.constant 0 : i32
    return %c0_i32, %arg0 : i32, i32
  }
  func.func @transform_2(%arg0: i32, %arg1: i32, %arg2: memref<1xi32, #tpu.memory_space<smem>>) -> (i32, i32) {
    %c0_i32 = arith.constant 0 : i32
    return %arg1, %arg0 : i32, i32
  }
}

</mosaic_0001>

<llo_original>
// kernel: tpu_custom_call.1
$region0: #{tpu_custom_call.1}
  #allocation0 [shape = 'u32[]', space=smem, size = 0x4, offset = 0x4, fixed_abs, tag = 'smem constant byte address 0x4 - core index']
  #allocation1 [shape = 'u32[144,128]{1,0:T(1,128)}', space=vmem, size = 0x12000, scoped, tag = 'internal scratch']
  #allocation2 [shape = 's32[1]{0}', space=sflag, size = 0x4, scoped, tag = 'scoped memory for tpu_custom_call.1']
  #allocation3 [shape = 's32[1]{0:T(128)S(6)}', space=smem, size = 0x200, scoped, tag = 'prefetched SMEM operand 0']
  %s0 = inlined_call_operand.<no memory space> [shape: s32[1], index: 0, kind: input, shape index: {}]
  %s1 = inlined_call_operand.hbm [shape: f32[2,256], index: 1, kind: input, shape index: {}]
  %s2 = inlined_call_operand.vmem [shape: f32[1,256], index: 2, kind: input, shape index: {}]
  %s3 = inlined_call_operand.hbm [shape: f32[2,256], index: 3, kind: output, shape index: {}]
  %s4 = sld [smem:[#allocation0]]
  $region22: #{tpu_custom_call.1} parent=0
    _
  %s6 = ssub.s32 1, %s4
  %s7 = scalar_select 0, %s6, %s4
  %8 = sst [smem:[#allocation3]] %s0
  $region1: #{tpu_custom_call.1} parent=0
    #allocation4 [shape = 'u8[2048]{0}', space=vmem, size = 0x800, scoped, tag = 'input window, operand 1, single buffered']
    #allocation5 [shape = 's32[1]{0}', space=sflag, size = 0x4, scoped, tag = 'scoped memory for tpu_custom_call.1']
    #allocation6 [shape = 's32[1]{0}', space=sflag, size = 0x4, scoped, tag = 'scoped memory for tpu_custom_call.1']
    #allocation7 [shape = 'u8[2048]{0}', space=vmem, size = 0x800, scoped, tag = 'output window, operand 0, single buffered']
    %9 = vsyncpa [#allocation5], 0
    %10 = vsyncpa [#allocation6], 0
    // Predicated region
    $region2: #{tpu_custom_call.1} parent=1 // pred_check
      _
    $region3: #{tpu_custom_call.1} parent=1 // pred_check_branch
      %12 = sbr.rel (0) target = $region5
    $region4: #{tpu_custom_call.1} parent=1 // pred_region
      %s14 = ssub.s32 64, 64
      %15 = vsyncadd [#allocation5], %s14
      %s17 = sshll.u32 [#allocation4], 4
      %s18 = int_to_ptr.vmem [resolvable:$true] %s17
      %20 = dma.hbm_to_vmem [thread:$0]  %s1, 64, %s18, [#allocation5]
    $region5: #{tpu_custom_call.1} parent=1 // pred_fallthru
      _
    // Predicated region
    $region6: #{tpu_custom_call.1} parent=1 // pred_check
      _
    $region7: #{tpu_custom_call.1} parent=1 // pred_check_branch
      %22 = sbr.rel (0) target = $region9
    $region8: #{tpu_custom_call.1} parent=1 // pred_region
      _
    $region9: #{tpu_custom_call.1} parent=1 // pred_fallthru
      _
    // Predicated region
    $region10: #{tpu_custom_call.1} parent=1 // pred_check
      _
    $region11: #{tpu_custom_call.1} parent=1 // pred_check_branch
      %24 = sbr.rel (0) target = $region13
    $region12: #{tpu_custom_call.1} parent=1 // pred_region
      %25 = dma.done [#allocation5], 64
    $region13: #{tpu_custom_call.1} parent=1 // pred_fallthru
      _
    %v26 = vld [vmem:[#allocation4] sm:$0xf]
    %v27 = vld [vmem:[%s2] sm:$0x3]
    %v29 = vlaneseq
    %v30 = vshrl.u32 %v29, 7
    %v31 = vsub.s32 0, %v30
    %v32 = vrot.slane %v27, %v31
    %v33 = vlaneseq
    %v34 = vshrl.u32 %v33, 7
    %v35 = vsub.s32 1, %v34
    %v36 = vrot.slane %v27, %v35
    %v37 = vcombine.low %v32, %v36
    %v39 = vunpack.c.l.s4 1983009808
    %v40 = vunpack.c.0.s8 %v39
    %v41 = vlaneseq
    %v42 = vshrl.u32 %v41, 7
    %v43 = vsub.s32 %v40, %v42
    %v44 = vrot.slane %v37, %v43
    %v46 = vadd.f32 %v26, %v44
    %47 = vst [vmem:[#allocation7] sm:$0xf] %v46
    // Predicated region
    $region14: #{tpu_custom_call.1} parent=1 // pred_check
      _
    $region15: #{tpu_custom_call.1} parent=1 // pred_check_branch
      %49 = sbr.rel (0) target = $region17
    $region16: #{tpu_custom_call.1} parent=1 // pred_region
      %s51 = ssub.s32 64, 64
      %52 = vsyncadd [#allocation6], %s51
      %s54 = sshll.u32 [#allocation7], 4
      %s55 = int_to_ptr.vmem [resolvable:$true] %s54
      %57 = dma.vmem_to_hbm [thread:$0]  %s55, 64, %s3, [#allocation6]
    $region17: #{tpu_custom_call.1} parent=1 // pred_fallthru
      _
    // Predicated region
    $region18: #{tpu_custom_call.1} parent=1 // pred_check
      _
    $region19: #{tpu_custom_call.1} parent=1 // pred_check_branch
      %59 = sbr.rel (0) target = $region21
    $region20: #{tpu_custom_call.1} parent=1 // pred_region
      %60 = dma.done [#allocation6], 64
    $region21: #{tpu_custom_call.1} parent=1 // pred_fallthru
      _
    %61 = vsyncpa [#allocation5], 1
    %62 = vsyncpa [#allocation6], 1

</llo_original>
